<compile_context>
chip_gen: v7x
topology: tpu7x:2x2x1
jax: 0.10.0
libtpu: 0.0.40
codegen_flags: <defaults>
</compile_context>

<pallas_src>
import functools

import jax
import jax.numpy as jnp
from jax.experimental import pallas as pl
from jax.experimental.pallas import tpu as pltpu

IMAGE_SIZE = 128   # stand-in for SAM's 1024 (self.image_size / resize_transform.size)
PATCH_SIZE = 16    # SAM's 16x16 patch-embed conv (kernel == stride)
EMBED_DIM = 128    # stand-in for SAM's embedding width (kept a multiple of 128)
NUM_CHANNELS = 3

PIXEL_MEAN = (123.675 / 255, 116.28 / 255, 103.53 / 255)
PIXEL_STD = (58.395 / 255, 57.12 / 255, 57.375 / 255)
# ((x / 255) - mean) / std  ==  x * NORM_SCALE - NORM_OFFSET   (folded at trace time)
NORM_SCALE = tuple(1.0 / (255.0 * s) for s in PIXEL_STD)
NORM_OFFSET = tuple(m / s for m, s in zip(PIXEL_MEAN, PIXEL_STD))


def _pick_tile(dim, candidates):
    # NOTE: falls back to the full dimension if nothing divides it.  In this script
    # all dims are powers of two so a candidate always matches; for arbitrary SAM-like
    # shapes, pad M up front instead of relying on the fallback (VMEM / (8,128) risk).
    for c in candidates:
        if c <= dim and dim % c == 0:
            return c
    return dim


def _pick_row_block(s):
    # Prefer a block strictly smaller than the image so the grid has >= 2 steps
    # (pipelining + both TensorCores on v7x); all candidates are multiples of 8.
    for cand in (256, 128, 64, 32, 16, 8):
        if cand < s and s % cand == 0:
            return cand
    return s


# ---------------------------------------------------------------------------
# Kernel 1: fused normalize + pad mask (row-blocked, bf16 output)
# ---------------------------------------------------------------------------
def _preprocess_kernel(h, w, x_ref, o_ref):
    """x_ref: (C, rb, S) f32 row band of the zero-padded raw image (pixels in [0,255]).
    o_ref: (C, rb, S) bf16 = ((x/255) - mean) / std inside the valid h x w region,
    exact zeros outside (reference pads AFTER normalization).

    One FMA per element (scale/offset are compile-time scalars -> no mean/std DMAs),
    f32 compute (v5e has no bf16 VPU), bf16 cast only at the store.  The pad region is
    handled with a select so every store is a full-width, lane-dense slab."""
    _, rb, s = x_ref.shape
    row0 = pl.program_id(0) * rb
    row_ids = row0 + jax.lax.broadcasted_iota(jnp.int32, (rb, s), 0)
    col_ids = jax.lax.broadcasted_iota(jnp.int32, (rb, s), 1)
    valid = (row_ids < h) & (col_ids < w)
    for c in range(NUM_CHANNELS):
        xn = x_ref[c] * NORM_SCALE[c] - NORM_OFFSET[c]
        o_ref[c] = jnp.where(valid, xn, 0.0).astype(o_ref.dtype)


def preprocess_pallas(x_chw_padded, h, w):
    """x_chw_padded: (C, S, S) f32, raw pixels zero-padded bottom/right beyond (h, w)."""
    c, s, s2 = x_chw_padded.shape
    assert s == s2
    rb = _pick_row_block(s)
    kernel = functools.partial(_preprocess_kernel, h, w)
    return pl.pallas_call(
        kernel,
        out_shape=jax.ShapeDtypeStruct((c, s, s), jnp.bfloat16),
        grid=(s // rb,),
        in_specs=[pl.BlockSpec((c, rb, s), lambda i: (0, i, 0))],
        out_specs=pl.BlockSpec((c, rb, s), lambda i: (0, i, 0)),
        compiler_params=pltpu.CompilerParams(
            dimension_semantics=("parallel",),
            vmem_limit_bytes=32 * 1024 * 1024,
        ),
    )(x_chw_padded.astype(jnp.float32))


# ---------------------------------------------------------------------------
# Kernel 2: weight-resident patch-embed matmul (bf16 in / bf16 out, f32 accumulate)
# ---------------------------------------------------------------------------
def _patch_embed_kernel(p_ref, w_ref, b_ref, o_ref):
    """p_ref (tm, K) bf16 patches, w_ref (K, E) bf16 weight (VMEM-resident across the
    grid: constant index_map), b_ref (1, E) f32 bias, o_ref (tm, E) bf16."""
    acc = jnp.dot(p_ref[...], w_ref[...], preferred_element_type=jnp.float32)
    o_ref[...] = (acc + b_ref[...]).astype(o_ref.dtype)


def patch_embed_pallas(patches_bf16, w_bf16, b_f32):
    m, k = patches_bf16.shape
    k2, n = w_bf16.shape
    assert k == k2
    # Full-K / full-N blocks: the bf16 weight (~1.1 MiB at SAM scale) is fetched once
    # and held in VMEM (constant index_map), so the patch matrix streams through HBM
    # exactly once.  tm <= 512 keeps double-buffered patch/output tiles + the resident
    # weight under a few MiB -- safe on v7x's 64 MiB VMEM.  (v6e/v5e with 128 MiB VMEM
    # could sweep tm higher / deeper buffering; do NOT copy that to v7x.)
    tm = _pick_tile(m, (512, 256, 128, 64, 32, 16, 8))
    grid = (m // tm,)
    return pl.pallas_call(
        _patch_embed_kernel,
        out_shape=jax.ShapeDtypeStruct((m, n), jnp.bfloat16),
        grid=grid,
        in_specs=[
            pl.BlockSpec((tm, k), lambda i: (i, 0)),
            pl.BlockSpec((k, n), lambda i: (0, 0)),   # resident weight
            pl.BlockSpec((1, n), lambda i: (0, 0)),   # resident bias
        ],
        out_specs=pl.BlockSpec((tm, n), lambda i: (i, 0)),
        compiler_params=pltpu.CompilerParams(
            dimension_semantics=("parallel",),
            vmem_limit_bytes=32 * 1024 * 1024,
        ),
    )(patches_bf16, w_bf16, b_f32.reshape(1, n))


# ---------------------------------------------------------------------------
# Wrapper (glue in plain JAX: resize / permute / im2col / final layout)
# ---------------------------------------------------------------------------
def get_preprocess_shape(oldh, oldw, long_side_length):
    scale = long_side_length * 1.0 / max(oldh, oldw)
    newh, neww = oldh * scale, oldw * scale
    return int(newh + 0.5), int(neww + 0.5)


def convert_conv_weight(w_ecpp):
    """PyTorch Conv2d patch-embed weight (E, C, P, P) -> (C*P*P, E), matching the
    (c, py, px) flattening order used by the im2col below."""
    e = w_ecpp.shape[0]
    return jnp.transpose(w_ecpp.reshape(e, -1), (1, 0))


def _im2col_bf16(x_css):
    """(C, S, S) bf16 padded image -> (g*g, C*P*P) bf16 patches, (c, py, px) order.
    TODO(synk): this rearrange could be fused into the preprocess kernel output
    (patch-major emit), removing one more HBM round trip; it needs an in-kernel
    lane<->sublane relayout so it is kept as cheap bf16 XLA glue here."""
    c, s, _ = x_css.shape
    g = s // PATCH_SIZE
    return (
        x_css.reshape(c, g, PATCH_SIZE, g, PATCH_SIZE)
        .transpose(1, 3, 0, 2, 4)                 # (gy, gx, C, Py, Px)
        .reshape(g * g, c * PATCH_SIZE * PATCH_SIZE)
    )


def encoder_model_forward(image_hwc, params, use_preprocess=True):
    """Mirrors EncoderModel.forward: preprocess (resize / normalize / pad) then the
    image_encoder patch embedding. image_hwc: (H, W, 3) float pixels in [0, 255]."""
    if use_preprocess:
        h, w, _ = image_hwc.shape
        x_chw = jnp.transpose(image_hwc, (2, 0, 1))  # HWC -> CHW (image.permute(2,0,1))
        if max(h, w) != IMAGE_SIZE:
            h, w = get_preprocess_shape(h, w, IMAGE_SIZE)
            # TODO(synk): torchvision's antialiased bilinear resize is approximated
            # with jax.image.resize; interpolation is wrapper glue, not a kernel.
            x_chw = jax.image.resize(x_chw, (NUM_CHANNELS, h, w), method="bilinear")
        # Zero-pad the raw resized image to (C, S, S) so every kernel block is full and
        # in-bounds; the kernel re-zeros the pad band *after* normalization (matching
        # F.pad-after-Normalize in the reference).
        x_pad = jnp.pad(x_chw, ((0, 0), (0, IMAGE_SIZE - h), (0, IMAGE_SIZE - w)))
        x_css = preprocess_pallas(x_pad, h, w)        # (3, S, S) bf16
    else:
        # Assumed already (1, 3, S, S), normalized and padded by the caller.
        assert image_hwc.ndim == 4 and image_hwc.shape[1] == NUM_CHANNELS
        assert image_hwc.shape[2] % PATCH_SIZE == 0 and image_hwc.shape[3] % PATCH_SIZE == 0
        x_css = image_hwc[0].astype(jnp.bfloat16)

    # ---- image_encoder ----
    # TODO(synk): only the patch-embedding conv of the SAM image encoder is defined by
    # the provided source; the ViT blocks / neck are out of scope here.
    s = x_css.shape[-1]
    g = s // PATCH_SIZE
    patches = _im2col_bf16(x_css)                                     # (g*g, C*P*P) bf16
    emb = patch_embed_pallas(patches, params["patch_w"], params["patch_b"])  # (g*g, E) bf16
    # back to NCHW image-embedding layout (1, E, g, g); the transpose now moves bf16.
    return emb.reshape(g, g, EMBED_DIM).transpose(2, 0, 1)[None]


def init_params(key):
    kw, kb = jax.random.split(key)
    # Create in PyTorch Conv2d layout (E, C, P, P), then convert + cast to bf16 exactly
    # the way real SAM patch-embed weights would be loaded.
    w_ecpp = 0.02 * jax.random.normal(
        kw, (EMBED_DIM, NUM_CHANNELS, PATCH_SIZE, PATCH_SIZE), jnp.float32)
    patch_w = convert_conv_weight(w_ecpp).astype(jnp.bfloat16)   # (C*P*P, E) bf16
    patch_b = 0.01 * jax.random.normal(kb, (EMBED_DIM,), jnp.float32)
    return {"patch_w": patch_w, "patch_b": patch_b}


if __name__ == "__main__":
    key = jax.random.PRNGKey(0)
    k_img, k_par = jax.random.split(key)

    # Small synthetic "raw image": HWC float pixel values in [0, 255]; the long side
    # (112) != IMAGE_SIZE so the resize + bottom zero-pad path is exercised.
    input_image = jax.random.uniform(k_img, (96, 112, 3), jnp.float32) * 255.0
    params = init_params(k_par)

    out = encoder_model_forward(input_image, params, use_preprocess=True)
    out = jax.block_until_ready(out)

    g = IMAGE_SIZE // PATCH_SIZE
    assert out.shape == (1, EMBED_DIM, g, g), out.shape
    assert jnp.all(jnp.isfinite(out.astype(jnp.float32)))
    print("KERNEL_OK")
</pallas_src>

<mosaic_0001>
module attributes {stable_mosaic.version = 11 : i64} {
  func.func @_preprocess_kernel(%arg0: i32, %arg1: memref<3x64x128xf32, #tpu.memory_space<vmem>>, %arg2: memref<3x64x128xbf16, #tpu.memory_space<vmem>>) attributes {dimension_semantics = [#tpu.dimension_semantics<parallel>], iteration_bounds = array<i64: 2>, scalar_prefetch = 0 : i64, scratch_operands = 0 : i64, tpu.core_type = #tpu.core_type<tc>, window_params = [{transform_indices = @transform_0, window_bounds = array<i64: 3, 64, 128>}, {transform_indices = @transform_1, window_bounds = array<i64: 3, 64, 128>}]} {
    %c64_i32 = arith.constant 64 : i32
    %0 = arith.muli %arg0, %c64_i32 : i32
    %1 = tpu.iota {dimensions = array<i32: 0>} : vector<64x128xi32>
    %2 = vector.broadcast %0 : i32 to vector<64x128xi32>
    %3 = arith.addi %2, %1 : vector<64x128xi32>
    %4 = tpu.iota {dimensions = array<i32: 1>} : vector<64x128xi32>
    %c110_i32 = arith.constant 110 : i32
    %5 = vector.broadcast %c110_i32 : i32 to vector<64x128xi32>
    %6 = arith.cmpi slt, %3, %5 : vector<64x128xi32>
    %c128_i32 = arith.constant 128 : i32
    %7 = vector.broadcast %c128_i32 : i32 to vector<64x128xi32>
    %8 = arith.cmpi slt, %4, %7 : vector<64x128xi32>
    %9 = arith.andi %6, %8 : vector<64x128xi1>
    %c0 = arith.constant 0 : index
    %c0_0 = arith.constant 0 : index
    %c0_1 = arith.constant 0 : index
    %10 = vector.load %arg1[%c0, %c0_0, %c0_1] : memref<3x64x128xf32, #tpu.memory_space<vmem>>, vector<1x64x128xf32>
    %11 = vector.shape_cast %10 : vector<1x64x128xf32> to vector<64x128xf32>
    %cst = arith.constant 0.0171247534 : f32
    %12 = vector.broadcast %cst : f32 to vector<64x128xf32>
    %13 = arith.mulf %11, %12 : vector<64x128xf32>
    %cst_2 = arith.constant 2.11790395 : f32
    %14 = vector.broadcast %cst_2 : f32 to vector<64x128xf32>
    %15 = arith.subf %13, %14 : vector<64x128xf32>
    %cst_3 = arith.constant 0.000000e+00 : f32
    %16 = vector.broadcast %cst_3 : f32 to vector<64x128xf32>
    %17 = arith.select %9, %15, %16 : vector<64x128xi1>, vector<64x128xf32>
    %18 = arith.truncf %17 : vector<64x128xf32> to vector<64x128xbf16>
    %c0_4 = arith.constant 0 : index
    %c0_5 = arith.constant 0 : index
    %c0_6 = arith.constant 0 : index
    %19 = vector.load %arg2[%c0_4, %c0_5, %c0_6] : memref<3x64x128xbf16, #tpu.memory_space<vmem>>, vector<1x64x128xbf16>
    %20 = vector.shape_cast %19 : vector<1x64x128xbf16> to vector<64x128xbf16>
    %21 = vector.shape_cast %18 : vector<64x128xbf16> to vector<1x64x128xbf16>
    tpu.vector_store %arg2[%c0_4, %c0_5, %c0_6], %21 {strides = array<i32>} : memref<3x64x128xbf16, #tpu.memory_space<vmem>>, vector<1x64x128xbf16>,
    %c1 = arith.constant 1 : index
    %c0_7 = arith.constant 0 : index
    %c0_8 = arith.constant 0 : index
    %22 = vector.load %arg1[%c1, %c0_7, %c0_8] : memref<3x64x128xf32, #tpu.memory_space<vmem>>, vector<1x64x128xf32>
    %23 = vector.shape_cast %22 : vector<1x64x128xf32> to vector<64x128xf32>
    %cst_9 = arith.constant 0.0175070036 : f32
    %24 = vector.broadcast %cst_9 : f32 to vector<64x128xf32>
    %25 = arith.mulf %23, %24 : vector<64x128xf32>
    %cst_10 = arith.constant 2.03571439 : f32
    %26 = vector.broadcast %cst_10 : f32 to vector<64x128xf32>
    %27 = arith.subf %25, %26 : vector<64x128xf32>
    %cst_11 = arith.constant 0.000000e+00 : f32
    %28 = vector.broadcast %cst_11 : f32 to vector<64x128xf32>
    %29 = arith.select %9, %27, %28 : vector<64x128xi1>, vector<64x128xf32>
    %30 = arith.truncf %29 : vector<64x128xf32> to vector<64x128xbf16>
    %c1_12 = arith.constant 1 : index
    %c0_13 = arith.constant 0 : index
    %c0_14 = arith.constant 0 : index
    %31 = vector.load %arg2[%c1_12, %c0_13, %c0_14] : memref<3x64x128xbf16, #tpu.memory_space<vmem>>, vector<1x64x128xbf16>
    %32 = vector.shape_cast %31 : vector<1x64x128xbf16> to vector<64x128xbf16>
    %33 = vector.shape_cast %30 : vector<64x128xbf16> to vector<1x64x128xbf16>
    tpu.vector_store %arg2[%c1_12, %c0_13, %c0_14], %33 {strides = array<i32>} : memref<3x64x128xbf16, #tpu.memory_space<vmem>>, vector<1x64x128xbf16>,
    %c2 = arith.constant 2 : index
    %c0_15 = arith.constant 0 : index
    %c0_16 = arith.constant 0 : index
    %34 = vector.load %arg1[%c2, %c0_15, %c0_16] : memref<3x64x128xf32, #tpu.memory_space<vmem>>, vector<1x64x128xf32>
    %35 = vector.shape_cast %34 : vector<1x64x128xf32> to vector<64x128xf32>
    %cst_17 = arith.constant 0.0174291935 : f32
    %36 = vector.broadcast %cst_17 : f32 to vector<64x128xf32>
    %37 = arith.mulf %35, %36 : vector<64x128xf32>
    %cst_18 = arith.constant 1.80444443 : f32
    %38 = vector.broadcast %cst_18 : f32 to vector<64x128xf32>
    %39 = arith.subf %37, %38 : vector<64x128xf32>
    %cst_19 = arith.constant 0.000000e+00 : f32
    %40 = vector.broadcast %cst_19 : f32 to vector<64x128xf32>
    %41 = arith.select %9, %39, %40 : vector<64x128xi1>, vector<64x128xf32>
    %42 = arith.truncf %41 : vector<64x128xf32> to vector<64x128xbf16>
    %c2_20 = arith.constant 2 : index
    %c0_21 = arith.constant 0 : index
    %c0_22 = arith.constant 0 : index
    %43 = vector.load %arg2[%c2_20, %c0_21, %c0_22] : memref<3x64x128xbf16, #tpu.memory_space<vmem>>, vector<1x64x128xbf16>
    %44 = vector.shape_cast %43 : vector<1x64x128xbf16> to vector<64x128xbf16>
    %45 = vector.shape_cast %42 : vector<64x128xbf16> to vector<1x64x128xbf16>
    tpu.vector_store %arg2[%c2_20, %c0_21, %c0_22], %45 {strides = array<i32>} : memref<3x64x128xbf16, #tpu.memory_space<vmem>>, vector<1x64x128xbf16>,
    return
  }
  func.func @transform_0(%arg0: i32) -> (i32, i32, i32) {
    %c0_i32 = arith.constant 0 : i32
    %c0_i32_0 = arith.constant 0 : i32
    %c0_i32_1 = arith.constant 0 : i32
    return %c0_i32, %arg0, %c0_i32_0 : i32, i32, i32
  }
  func.func @transform_1(%arg0: i32) -> (i32, i32, i32) {
    %c0_i32 = arith.constant 0 : i32
    %c0_i32_0 = arith.constant 0 : i32
    %c0_i32_1 = arith.constant 0 : i32
    return %c0_i32, %arg0, %c0_i32_0 : i32, i32, i32
  }
}

</mosaic_0001>

<llo_original>
// kernel: tpu_custom_call.1
$region0: #{tpu_custom_call.1}
  #allocation0 [shape = 'u32[]', space=smem, size = 0x4, offset = 0x4, fixed_abs, tag = 'smem constant byte address 0x4 - core index']
  #allocation1 [shape = 'u32[144,128]{1,0:T(1,128)}', space=vmem, size = 0x12000, scoped, tag = 'internal scratch']
  #allocation6 [shape = 's32[]', space=sflag, size = 0x4, offset = 0, fixed_abs, tag = 'sflag constant byte address 0x0 - dummy sync flag']
  #allocation8 [shape = 's32[]', space=sflag, size = 0x4, offset = 0, fixed_abs, tag = 'sflag constant byte address 0x0 - dummy sync flag']
  %s0 = inlined_call_operand.hbm [shape: f32[3,128,128], index: 0, kind: input, shape index: {}]
  %s1 = inlined_call_operand.hbm [shape: bf16[3,128,128], index: 1, kind: output, shape index: {}]
  %s2 = sld [smem:[#allocation0]]
  $region41: #{tpu_custom_call.1} parent=0
    _
  %s4 = ssub.s32 1, %s2
  %s5 = scalar_select 0, %s4, %s2
  $region1: #{tpu_custom_call.1} parent=0
    #allocation2 [shape = 'u8[196608]{0}', space=vmem, size = 0x30000, scoped, tag = 'input window, operand 0']
    #allocation3 [shape = 's32[2]{0}', space=sflag, size = 0x8, scoped, tag = 'scoped memory for tpu_custom_call.1']
    #allocation4 [shape = 's32[2]{0}', space=sflag, size = 0x8, scoped, tag = 'scoped memory for tpu_custom_call.1']
    #allocation5 [shape = 'u8[98304]{0}', space=vmem, size = 0x18000, scoped, tag = 'output window, operand 0']
    %6 = vsyncpa [#allocation3], 0
    %s7 = scalar_lea.sflag [#allocation3], 1
    %8 = vsyncpa %s7, 0
    %9 = vsyncpa [#allocation4], 0
    %s10 = scalar_lea.sflag [#allocation4], 1
    %11 = vsyncpa %s10, 0
    loop: start=0, step=1, limit=4
    $region2: #{tpu_custom_call.1} parent=1 // loop_pre_header
      _
    $region3: #{tpu_custom_call.1} parent=1 // loop_header
      %s13 = sphi 0, %s17
      %p14 = scmp.ge.s32.totalorder %s13, 4
      %s23 = sphi 0, %s25
      %s26 = sphi 0, %s23
      %s27 = sphi 0, %s26
      %s43 = sphi 0, %s27
      %s49 = sphi 0, %s51
      %s52 = sphi 0, %s49
      %s53 = sphi 0, %s52
      %s69 = sphi 0, %s53
    $region4: #{tpu_custom_call.1} parent=1 // loop_header_branch
      %16 = sbr.rel (%p14) target = $region8
    $region5: #{tpu_custom_call.1} parent=1 // loop_body
      %s18 = ssub.s32 %s13, 1
      %s19 = ssub.s32 %s13, 2
      %s20 = sadd.s32 %s13, 1
      %s21 = ssub.s32 %s13, %s20
      %p22 = scmp.eq.s32.totalorder %s21, 0
      %s24 = sadd.s32 %s23, 1
      %s25 = scalar_select %p22, %s23, %s24
      %p28 = pneg %p22
      %p29 = scmp.eq.s32.totalorder %s13, 1
      %p30 = por %p28, %p29
      %p31 = scmp.ne.s32.totalorder %s23, %s26
      %p32 = scmp.eq.s32.totalorder %s13, 0
      %p33 = por %p31, %p32
      %p34 = scmp.ne.s32.totalorder %s23, %s26
      %p35 = scmp.eq.s32.totalorder %s18, 1
      %p36 = por %p34, %p35
      %p37 = scmp.ne.s32.totalorder %s26, %s27
      %p38 = scmp.eq.s32.totalorder %s18, 0
      %p39 = por %p37, %p38
      %p40 = scmp.ne.s32.totalorder %s26, %s27
      %p41 = scmp.eq.s32.totalorder %s19, 1
      %p42 = por %p40, %p41
      %p44 = scmp.ne.s32.totalorder %s27, %s43
      %p45 = scmp.eq.s32.totalorder %s19, 0
      %p46 = por %p44, %p45
      %s47 = ssub.s32 %s13, %s20
      %p48 = scmp.eq.s32.totalorder %s47, 0
      %s50 = sadd.s32 %s49, 1
      %s51 = scalar_select %p48, %s49, %s50
      %p54 = pneg %p48
      %p55 = scmp.eq.s32.totalorder %s13, 1
      %p56 = por %p54, %p55
      %p57 = scmp.ne.s32.totalorder %s49, %s52
      %p58 = scmp.eq.s32.totalorder %s13, 0
      %p59 = por %p57, %p58
      %p60 = scmp.ne.s32.totalorder %s49, %s52
      %p61 = scmp.eq.s32.totalorder %s18, 1
      %p62 = por %p60, %p61
      %p63 = scmp.ne.s32.totalorder %s52, %s53
      %p64 = scmp.eq.s32.totalorder %s18, 0
      %p65 = por %p63, %p64
      %p66 = scmp.ne.s32.totalorder %s52, %s53
      %p67 = scmp.eq.s32.totalorder %s19, 1
      %p68 = por %p66, %p67
      %p70 = scmp.ne.s32.totalorder %s53, %s69
      %p71 = scmp.eq.s32.totalorder %s19, 0
      %p72 = por %p70, %p71
      %p73 = scmp.le.s32.totalorder 1, %s13
      %p74 = scmp.lt.s32.totalorder %s13, 3
      %p75 = pnand %p73, %p74
      %p76 = pneg %p75
      // Predicated region
      $region9: #{tpu_custom_call.1} parent=5 // pred_check
        _
      $region10: #{tpu_custom_call.1} parent=5 // pred_check_branch
        %78 = sbr.rel (%p75) target = $region12
      $region11: #{tpu_custom_call.1} parent=5 // pred_region
        %s79 = ssub.s32 %s13, 1
      $region12: #{tpu_custom_call.1} parent=5 // pred_fallthru
        _
      %p80 = scmp.lt.s32.totalorder %s13, 2
      // Predicated region
      $region13: #{tpu_custom_call.1} parent=5 // pred_check
        %p81 = pneg %p80
      $region14: #{tpu_custom_call.1} parent=5 // pred_check_branch
        %83 = sbr.rel (%p81) target = $region16
      $region15: #{tpu_custom_call.1} parent=5 // pred_region
        // Predicated region
        $region17: #{tpu_custom_call.1} parent=15 // pred_check
          %p84 = pneg %p33
        $region18: #{tpu_custom_call.1} parent=15 // pred_check_branch
          %86 = sbr.rel (%p84) target = $region20
        $region19: #{tpu_custom_call.1} parent=15 // pred_region
          #allocation7 [shape = 'u32[6]{0}', space=smem, size = 0x18, scoped, tag = 'DMA stride descriptor']
          %s87 = sand.u32 %s23, 1
          %s88 = scalar_lea.sflag [#allocation3], %s87
          %s89 = sand.u32 %s23, 1
          %s90 = smul.addr %s89, 192
          %s91 = scalar_lea.vmem [#allocation2], %s90
          %s92 = smul.u32 8, %s13
          %s94 = ssub.s32 3072, 3072
          %95 = vsyncadd %s88, %s94
          %s96 = smul.addr %s92, 128
          %s97 = scalar_lea.hbm %s0, %s96
          %s99 = sshll.u32 1, 14
          %s100 = sxor.u32 4294967295, %s99
          %s102 = sld [smem:[#allocation0]]
          %s103 = sadd.s32 2, %s102
          %s105 = sshll.u32 7, 26
          %s106 = sxor.u32 4294967295, %s105
          %s107 = sand.u32 0, %s106
          %s108 = sshll.u32 %s103, 26
          %s109 = sor.u32 %s107, %s108
          %s110 = sshll.u32 %s91, 4
          %s111 = int_to_ptr.vmem [resolvable:$true] %s110
          %117 = sst [smem:[#allocation7]] 2048
          %s118 = scalar_lea.smem [#allocation7], 1
          %119 = sst [smem:[%s118]] 1024
          %s120 = scalar_lea.smem [#allocation7], 2
          %121 = sst [smem:[%s120]] 8
          %s122 = scalar_lea.smem [#allocation7], 3
          %123 = sst [smem:[%s122]] 128
          %s124 = scalar_lea.smem [#allocation7], 4
          %125 = sst [smem:[%s124]] 128
          %s126 = scalar_lea.smem [#allocation7], 5
          %127 = sst [smem:[%s126]] 8
          %129 = dma.general %s97, 3072, %s111, %s88, [#allocation6], [#allocation7], %s109, 0
        $region20: #{tpu_custom_call.1} parent=15 // pred_fallthru
          _
      $region16: #{tpu_custom_call.1} parent=5 // pred_fallthru
        _
      %p130 = scmp.le.s32.totalorder 1, %s13
      %p131 = scmp.lt.s32.totalorder %s13, 3
      %p132 = pnand %p130, %p131
      %p133 = pneg %p132
      // Predicated region
      $region21: #{tpu_custom_call.1} parent=5 // pred_check
        _
      $region22: #{tpu_custom_call.1} parent=5 // pred_check_branch
        %135 = sbr.rel (%p132) target = $region24
      $region23: #{tpu_custom_call.1} parent=5 // pred_region
        %s136 = ssub.s32 %s13, 1
        %s137 = sand.u32 %s26, 1
        %s138 = scalar_lea.sflag [#allocation3], %s137
        %s139 = sand.u32 %s26, 1
        %s140 = smul.addr %s139, 192
        %s141 = scalar_lea.vmem [#allocation2], %s140
        // Predicated region
        $region25: #{tpu_custom_call.1} parent=23 // pred_check
          %p142 = pneg %p39
        $region26: #{tpu_custom_call.1} parent=23 // pred_check_branch
          %144 = sbr.rel (%p142) target = $region28
        $region27: #{tpu_custom_call.1} parent=23 // pred_region
          %145 = dma.done %s138, 3072
        $region28: #{tpu_custom_call.1} parent=23 // pred_fallthru
          _
        %s146 = sand.u32 %s26, 1
        %s147 = scalar_lea.sflag [#allocation3], %s146
        %s148 = sand.u32 %s26, 1
        %s149 = smul.addr %s148, 192
        %s150 = scalar_lea.vmem [#allocation2], %s149
        %p151 = pneg %p39
        %p152 = pneg %p36
        %p153 = pneg %p65
        %p154 = pneg %p62
        %s155 = sand.u32 %s52, 1
        %s156 = scalar_lea.sflag [#allocation4], %s155
        %s157 = sand.u32 %s52, 1
        %s158 = smul.addr %s157, 96
        %s159 = scalar_lea.vmem [#allocation5], %s158
        %s160 = smul.u32 8, %s18
        %s161 = smul.u32 8, %s18
        %s162 = smul.u32 %s18, 64
        %v163 = vlaneseq
        %v164 = vshrl.u32 %v163, 7
        %v165 = vadd.s32 %v164, 8
        %v166 = vadd.s32 %v164, 16
        %v167 = vadd.s32 %v164, 24
        %v168 = vadd.s32 %v164, 32
        %v169 = vadd.s32 %v164, 40
        %v170 = vadd.s32 %v164, 48
        %v171 = vadd.s32 %v164, 56
        %v172 = vstv %s162
        %v173 = vadd.s32 %v172, %v164
        %v174 = vadd.s32 %v172, %v165
        %v175 = vadd.s32 %v172, %v166
        %v176 = vadd.s32 %v172, %v167
        %v177 = vadd.s32 %v172, %v168
        %v178 = vadd.s32 %v172, %v169
        %v179 = vadd.s32 %v172, %v170
        %v180 = vadd.s32 %v172, %v171
        %v181 = vlaneseq
        %v182 = vand.u32 %v181, 127
        %vm183 = vcmp.lt.s32.totalorder %v173, 110
        %vm184 = vcmp.lt.s32.totalorder %v174, 110
        %vm185 = vcmp.lt.s32.totalorder %v175, 110
        %vm186 = vcmp.lt.s32.totalorder %v176, 110
        %vm187 = vcmp.lt.s32.totalorder %v177, 110
        %vm188 = vcmp.lt.s32.totalorder %v178, 110
        %vm189 = vcmp.lt.s32.totalorder %v179, 110
        %vm190 = vcmp.lt.s32.totalorder %v180, 110
        %vm191 = vcmp.lt.s32.totalorder %v182, 128
        %vm192 = vmand %vm183, %vm191
        %vm193 = vmand %vm184, %vm191
        %vm194 = vmand %vm185, %vm191
        %vm195 = vmand %vm186, %vm191
        %vm196 = vmand %vm187, %vm191
        %vm197 = vmand %vm188, %vm191
        %vm198 = vmand %vm189, %vm191
        %vm199 = vmand %vm190, %vm191
        %v200 = vld [vmem:[%s141] sm:$0xff]
        %v201 = vld [vmem:[%s141 + $0x8] sm:$0xff]
        %v202 = vld [vmem:[%s141 + $0x10] sm:$0xff]
        %v203 = vld [vmem:[%s141 + $0x18] sm:$0xff]
        %v204 = vld [vmem:[%s141 + $0x20] sm:$0xff]
        %v205 = vld [vmem:[%s141 + $0x28] sm:$0xff]
        %v206 = vld [vmem:[%s141 + $0x30] sm:$0xff]
        %v207 = vld [vmem:[%s141 + $0x38] sm:$0xff]
        %v208 = vmul.f32 %v200, 0.017124753
        %v209 = vmul.f32 %v201, 0.017124753
        %v210 = vmul.f32 %v202, 0.017124753
        %v211 = vmul.f32 %v203, 0.017124753
        %v212 = vmul.f32 %v204, 0.017124753
        %v213 = vmul.f32 %v205, 0.017124753
        %v214 = vmul.f32 %v206, 0.017124753
        %v215 = vmul.f32 %v207, 0.017124753
        %v216 = vsub.f32 %v208, 2.117904
        %v217 = vsub.f32 %v209, 2.117904
        %v218 = vsub.f32 %v210, 2.117904
        %v219 = vsub.f32 %v211, 2.117904
        %v220 = vsub.f32 %v212, 2.117904
        %v221 = vsub.f32 %v213, 2.117904
        %v222 = vsub.f32 %v214, 2.117904
        %v223 = vsub.f32 %v215, 2.117904
        %v224 = vsel %vm192, %v216, 0.0
        %v225 = vsel %vm193, %v217, 0.0
        %v226 = vsel %vm194, %v218, 0.0
        %v227 = vsel %vm195, %v219, 0.0
        %v228 = vsel %vm196, %v220, 0.0
        %v229 = vsel %vm197, %v221, 0.0
        %v230 = vsel %vm198, %v222, 0.0
        %v231 = vsel %vm199, %v223, 0.0
        %v232 = vpack.c.bf16 %v225, %v224
        %v233 = vpack.c.bf16 %v227, %v226
        %v234 = vpack.c.bf16 %v229, %v228
        %v235 = vpack.c.bf16 %v231, %v230
        %v240 = vunpack.c.l.b16 %v232
        %v241 = vunpack.c.h.b16 %v232
        %v242 = vunpack.c.l.b16 %v233
        %v243 = vunpack.c.h.b16 %v233
        %v244 = vunpack.c.l.b16 %v234
        %v245 = vunpack.c.h.b16 %v234
        %v246 = vunpack.c.l.b16 %v235
        %v247 = vunpack.c.h.b16 %v235
        %v248 = vpack.c.b16 %v240, %v240
        %v249 = vpack.c.b16 %v241, %v241
        %v250 = vpack.c.b16 %v242, %v242
        %v251 = vpack.c.b16 %v243, %v243
        %v252 = vpack.c.b16 %v244, %v244
        %v253 = vpack.c.b16 %v245, %v245
        %v254 = vpack.c.b16 %v246, %v246
        %v255 = vpack.c.b16 %v247, %v247
        %264 = vst [vmem:[%s159] sm:$0xf] %v248
        %265 = vst [vmem:[%s159 + $0x4] sm:$0xf] %v249
        %266 = vst [vmem:[%s159 + $0x8] sm:$0xf] %v250
        %267 = vst [vmem:[%s159 + $0xc] sm:$0xf] %v251
        %268 = vst [vmem:[%s159 + $0x10] sm:$0xf] %v252
        %269 = vst [vmem:[%s159 + $0x14] sm:$0xf] %v253
        %270 = vst [vmem:[%s159 + $0x18] sm:$0xf] %v254
        %271 = vst [vmem:[%s159 + $0x1c] sm:$0xf] %v255
        %s272 = scalar_lea.vmem %s141, 64 [#allocation2]
        %v273 = vld [vmem:[%s272] sm:$0xff]
        %v274 = vld [vmem:[%s272 + $0x8] sm:$0xff]
        %v275 = vld [vmem:[%s272 + $0x10] sm:$0xff]
        %v276 = vld [vmem:[%s272 + $0x18] sm:$0xff]
        %v277 = vld [vmem:[%s272 + $0x20] sm:$0xff]
        %v278 = vld [vmem:[%s272 + $0x28] sm:$0xff]
        %v279 = vld [vmem:[%s272 + $0x30] sm:$0xff]
        %v280 = vld [vmem:[%s272 + $0x38] sm:$0xff]
        %v281 = vmul.f32 %v273, 0.017507004
        %v282 = vmul.f32 %v274, 0.017507004
        %v283 = vmul.f32 %v275, 0.017507004
        %v284 = vmul.f32 %v276, 0.017507004
        %v285 = vmul.f32 %v277, 0.017507004
        %v286 = vmul.f32 %v278, 0.017507004
        %v287 = vmul.f32 %v279, 0.017507004
        %v288 = vmul.f32 %v280, 0.017507004
        %v289 = vsub.f32 %v281, 2.0357144
        %v290 = vsub.f32 %v282, 2.0357144
        %v291 = vsub.f32 %v283, 2.0357144
        %v292 = vsub.f32 %v284, 2.0357144
        %v293 = vsub.f32 %v285, 2.0357144
        %v294 = vsub.f32 %v286, 2.0357144
        %v295 = vsub.f32 %v287, 2.0357144
        %v296 = vsub.f32 %v288, 2.0357144
        %v297 = vsel %vm192, %v289, 0.0
        %v298 = vsel %vm193, %v290, 0.0
        %v299 = vsel %vm194, %v291, 0.0
        %v300 = vsel %vm195, %v292, 0.0
        %v301 = vsel %vm196, %v293, 0.0
        %v302 = vsel %vm197, %v294, 0.0
        %v303 = vsel %vm198, %v295, 0.0
        %v304 = vsel %vm199, %v296, 0.0
        %v305 = vpack.c.bf16 %v298, %v297
        %v306 = vpack.c.bf16 %v300, %v299
        %v307 = vpack.c.bf16 %v302, %v301
        %v308 = vpack.c.bf16 %v304, %v303
        %v313 = vunpack.c.l.b16 %v305
        %v314 = vunpack.c.h.b16 %v305
        %v315 = vunpack.c.l.b16 %v306
        %v316 = vunpack.c.h.b16 %v306
        %v317 = vunpack.c.l.b16 %v307
        %v318 = vunpack.c.h.b16 %v307
        %v319 = vunpack.c.l.b16 %v308
        %v320 = vunpack.c.h.b16 %v308
        %v321 = vpack.c.b16 %v313, %v313
        %v322 = vpack.c.b16 %v314, %v314
        %v323 = vpack.c.b16 %v315, %v315
        %v324 = vpack.c.b16 %v316, %v316
        %v325 = vpack.c.b16 %v317, %v317
        %v326 = vpack.c.b16 %v318, %v318
        %v327 = vpack.c.b16 %v319, %v319
        %v328 = vpack.c.b16 %v320, %v320
        %s337 = scalar_lea.vmem %s159, 32 [#allocation5]
        %338 = vst [vmem:[%s337] sm:$0xf] %v321
        %339 = vst [vmem:[%s337 + $0x4] sm:$0xf] %v322
        %340 = vst [vmem:[%s337 + $0x8] sm:$0xf] %v323
        %341 = vst [vmem:[%s337 + $0xc] sm:$0xf] %v324
        %342 = vst [vmem:[%s337 + $0x10] sm:$0xf] %v325
        %343 = vst [vmem:[%s337 + $0x14] sm:$0xf] %v326
        %344 = vst [vmem:[%s337 + $0x18] sm:$0xf] %v327
        %345 = vst [vmem:[%s337 + $0x1c] sm:$0xf] %v328
        %s346 = scalar_lea.vmem %s141, 128 [#allocation2]
        %v347 = vld [vmem:[%s346] sm:$0xff]
        %v348 = vld [vmem:[%s346 + $0x8] sm:$0xff]
        %v349 = vld [vmem:[%s346 + $0x10] sm:$0xff]
        %v350 = vld [vmem:[%s346 + $0x18] sm:$0xff]
        %v351 = vld [vmem:[%s346 + $0x20] sm:$0xff]
        %v352 = vld [vmem:[%s346 + $0x28] sm:$0xff]
        %v353 = vld [vmem:[%s346 + $0x30] sm:$0xff]
        %v354 = vld [vmem:[%s346 + $0x38] sm:$0xff]
        %v355 = vmul.f32 %v347, 0.017429193
        %v356 = vmul.f32 %v348, 0.017429193
        %v357 = vmul.f32 %v349, 0.017429193
        %v358 = vmul.f32 %v350, 0.017429193
        %v359 = vmul.f32 %v351, 0.017429193
        %v360 = vmul.f32 %v352, 0.017429193
        %v361 = vmul.f32 %v353, 0.017429193
        %v362 = vmul.f32 %v354, 0.017429193
        %v363 = vsub.f32 %v355, 1.8044444
        %v364 = vsub.f32 %v356, 1.8044444
        %v365 = vsub.f32 %v357, 1.8044444
        %v366 = vsub.f32 %v358, 1.8044444
        %v367 = vsub.f32 %v359, 1.8044444
        %v368 = vsub.f32 %v360, 1.8044444
        %v369 = vsub.f32 %v361, 1.8044444
        %v370 = vsub.f32 %v362, 1.8044444
        %v371 = vsel %vm192, %v363, 0.0
        %v372 = vsel %vm193, %v364, 0.0
        %v373 = vsel %vm194, %v365, 0.0
        %v374 = vsel %vm195, %v366, 0.0
        %v375 = vsel %vm196, %v367, 0.0
        %v376 = vsel %vm197, %v368, 0.0
        %v377 = vsel %vm198, %v369, 0.0
        %v378 = vsel %vm199, %v370, 0.0
        %v379 = vpack.c.bf16 %v372, %v371
        %v380 = vpack.c.bf16 %v374, %v373
        %v381 = vpack.c.bf16 %v376, %v375
        %v382 = vpack.c.bf16 %v378, %v377
        %v387 = vunpack.c.l.b16 %v379
        %v388 = vunpack.c.h.b16 %v379
        %v389 = vunpack.c.l.b16 %v380
        %v390 = vunpack.c.h.b16 %v380
        %v391 = vunpack.c.l.b16 %v381
        %v392 = vunpack.c.h.b16 %v381
        %v393 = vunpack.c.l.b16 %v382
        %v394 = vunpack.c.h.b16 %v382
        %v395 = vpack.c.b16 %v387, %v387
        %v396 = vpack.c.b16 %v388, %v388
        %v397 = vpack.c.b16 %v389, %v389
        %v398 = vpack.c.b16 %v390, %v390
        %v399 = vpack.c.b16 %v391, %v391
        %v400 = vpack.c.b16 %v392, %v392
        %v401 = vpack.c.b16 %v393, %v393
        %v402 = vpack.c.b16 %v394, %v394
        %s411 = scalar_lea.vmem %s159, 64 [#allocation5]
        %412 = vst [vmem:[%s411] sm:$0xf] %v395
        %413 = vst [vmem:[%s411 + $0x4] sm:$0xf] %v396
        %414 = vst [vmem:[%s411 + $0x8] sm:$0xf] %v397
        %415 = vst [vmem:[%s411 + $0xc] sm:$0xf] %v398
        %416 = vst [vmem:[%s411 + $0x10] sm:$0xf] %v399
        %417 = vst [vmem:[%s411 + $0x14] sm:$0xf] %v400
        %418 = vst [vmem:[%s411 + $0x18] sm:$0xf] %v401
        %419 = vst [vmem:[%s411 + $0x1c] sm:$0xf] %v402
        %s420 = sand.u32 %s52, 1
        %s421 = scalar_lea.sflag [#allocation4], %s420
        %s422 = sand.u32 %s52, 1
        %s423 = smul.addr %s422, 96
        %s424 = scalar_lea.vmem [#allocation5], %s423
        // Predicated region
        $region29: #{tpu_custom_call.1} parent=23 // pred_check
          %p425 = pneg %p62
        $region30: #{tpu_custom_call.1} parent=23 // pred_check_branch
          %427 = sbr.rel (%p425) target = $region32
        $region31: #{tpu_custom_call.1} parent=23 // pred_region
          #allocation9 [shape = 'u32[6]{0}', space=smem, size = 0x18, scoped, tag = 'DMA stride descriptor']
          %s428 = smul.u32 8, %s18
          %s430 = ssub.s32 1536, 1536
          %431 = vsyncadd %s421, %s430
          %s432 = smul.addr %s428, 64
          %s433 = scalar_lea.hbm %s1, %s432
          %s435 = sshll.u32 1, 14
          %s436 = sxor.u32 4294967295, %s435
          %s439 = sshll.u32 7, 18
          %s440 = sxor.u32 4294967295, %s439
          %s441 = sand.u32 0, %s440
          %s443 = sor.u32 %s441, 0
          %s445 = sshll.u32 3, 24
          %s446 = sxor.u32 4294967295, %s445
          %s447 = sand.u32 %s443, %s446
          %s449 = sor.u32 %s447, 0
          %s450 = sshll.u32 %s424, 4
          %s451 = int_to_ptr.vmem [resolvable:$true] %s450
          %457 = sst [smem:[#allocation9]] 512
          %s458 = scalar_lea.smem [#allocation9], 1
          %459 = sst [smem:[%s458]] 1024
          %s460 = scalar_lea.smem [#allocation9], 2
          %461 = sst [smem:[%s460]] 8
          %s462 = scalar_lea.smem [#allocation9], 3
          %463 = sst [smem:[%s462]] 64
          %s464 = scalar_lea.smem [#allocation9], 4
          %465 = sst [smem:[%s464]] 64
          %s466 = scalar_lea.smem [#allocation9], 5
          %467 = sst [smem:[%s466]] 4
          %469 = dma.general %s451, 1536, %s433, %s421, [#allocation8], [#allocation9], %s449, 0
        $region32: #{tpu_custom_call.1} parent=23 // pred_fallthru
          _
      $region24: #{tpu_custom_call.1} parent=5 // pred_fallthru
        _
      %p470 = scmp.le.s32.totalorder 2, %s13
      // Predicated region
      $region33: #{tpu_custom_call.1} parent=5 // pred_check
        %p471 = pneg %p470
      $region34: #{tpu_custom_call.1} parent=5 // pred_check_branch
        %473 = sbr.rel (%p471) target = $region36
      $region35: #{tpu_custom_call.1} parent=5 // pred_region
        %s474 = ssub.s32 %s13, 2
        // Predicated region
        $region37: #{tpu_custom_call.1} parent=35 // pred_check
          %p475 = pneg %p68
        $region38: #{tpu_custom_call.1} parent=35 // pred_check_branch
          %477 = sbr.rel (%p475) target = $region40
        $region39: #{tpu_custom_call.1} parent=35 // pred_region
          %s478 = sand.u32 %s53, 1
          %s479 = scalar_lea.sflag [#allocation4], %s478
          %s480 = sand.u32 %s53, 1
          %s481 = smul.addr %s480, 96
          %s482 = scalar_lea.vmem [#allocation5], %s481
          %483 = dma.done %s479, 1536
        $region40: #{tpu_custom_call.1} parent=35 // pred_fallthru
          _
      $region36: #{tpu_custom_call.1} parent=5 // pred_fallthru
        _
    $region6: #{tpu_custom_call.1} parent=1 // loop_footer
      %s17 = sadd.s32 1, %s13
    $region7: #{tpu_custom_call.1} parent=1 // loop_footer_branch
      %12 = sbr.rel target = $region3
    $region8: #{tpu_custom_call.1} parent=1 // loop_exit
      _
    %484 = vsyncpa [#allocation3], 1
    %s485 = scalar_lea.sflag [#allocation3], 1
    %486 = vsyncpa %s485, 1
    %487 = vsyncpa [#allocation4], 1
    %s488 = scalar_lea.sflag [#allocation4], 1
    %489 = vsyncpa %s488, 1

</llo_original>
